<compile_context>
chip_gen: v5e
topology: v5e:2x2
jax: 0.10.0
libtpu: 0.0.40
codegen_flags: <defaults>
</compile_context>

<pallas_src>
import functools

import jax
import jax.numpy as jnp
import numpy as np
from jax.experimental import pallas as pl
from jax.experimental.pallas import tpu as pltpu

_LANES = 128
_GRANULE = 32 * _LANES  # 4096-lane pixel granule -> sublane dim is always a multiple of 32


def _dice_sums_kernel(x_ref, t_ref, inter_ref, card_ref, *, num_classes, approx_recip):
    """Accumulate per-class intersection and cardinality partial sums.

    x_ref:     (C, S, 128) logits block (any float dtype; upcast to f32 here)
    t_ref:     (S, 128)    integer labels (-1 on padded pixels)
    inter_ref, (C, 128)    running per-class partials, resident across the innermost
    card_ref:              (pixel-tile) grid axis.
    """
    j = pl.program_id(2)

    @pl.when(j == 0)
    def _():
        inter_ref[...] = jnp.zeros_like(inter_ref)
        card_ref[...] = jnp.zeros_like(card_ref)

    x = x_ref[...].astype(jnp.float32)                        # (C, S, 128)
    if num_classes == 1:
        # Reference semantics for a single channel: sigmoid; one-hot == (target == 0).
        prob = jax.nn.sigmoid(x)
    else:
        # Softmax over the leading channel axis: C-1 elementwise maxes/adds over full
        # (S, 128) slabs (VPU), exp on the EUP, one reciprocal per pixel.
        m = jnp.max(x, axis=0, keepdims=True)
        e = jnp.exp(x - m)
        inv = pl.reciprocal(jnp.sum(e, axis=0, keepdims=True), approx=approx_recip)
        prob = e * inv

    tgt = t_ref[...].astype(jnp.int32)                        # (S, 128); -1 on padding
    ch = jax.lax.broadcasted_iota(jnp.int32, prob.shape, 0)   # class id per slab
    eq = ch == tgt                                            # (C, S, 128); False on padding

    # Per-step reduction over the sublane axis keeps accumulators at (C, 128) regardless
    # of tile size; selects instead of multiplies for the intersection, and
    # sum(prob) + sum(onehot) fused into a single select + reduce for the cardinality.
    inter_ref[...] += jnp.sum(jnp.where(eq, prob, 0.0), axis=1)
    card_ref[...] += jnp.sum(jnp.where(eq, prob + 1.0, prob), axis=1)


def dice_loss(logits, target, *, smooth=1.0, reduction="mean",
              target_block_bytes=2 * 1024 * 1024, compute_dtype=None,
              approx_recip=True):
    """Dice loss matching the PyTorch DiceLoss.forward.

    logits: (N, C, H, W) float; target: (N, H, W) integer class labels.
    Returns a scalar for reduction in {'mean', 'sum'}; a per-class (C,) loss for 'none'.
    """
    assert reduction in ("mean", "sum", "none")
    N, C, H, W = logits.shape
    HW = H * W

    # ---- streaming dtypes: narrow the HBM streams where it is free --------------------
    if compute_dtype is None:
        # Demote f32 logits to bf16 only when a padding copy happens anyway (the cast
        # fuses with it); otherwise keep the caller's dtype to avoid an extra HBM pass.
        compute_dtype = (jnp.bfloat16
                         if (logits.dtype == jnp.float32 and HW % _GRANULE != 0)
                         else logits.dtype)
    compute_dtype = jnp.dtype(compute_dtype)
    t_dtype = jnp.int8 if C <= 127 else (jnp.int16 if C <= 32767 else jnp.int32)

    # ---- byte-targeted pixel tile (amortize the ~0.35us per-grid-step overhead) -------
    itemsize = compute_dtype.itemsize
    tile_hw = max(_GRANULE,
                  (int(target_block_bytes) // (C * itemsize)) // _GRANULE * _GRANULE)
    tile_hw = min(tile_hw, pl.cdiv(HW, _GRANULE) * _GRANULE)
    num_tiles = pl.cdiv(HW, tile_hw)

    # v7x: give both TensorCores work even when N == 1 via an extra 'parallel' split axis.
    num_splits = 2 if (N == 1 and num_tiles >= 2) else 1
    tiles_per_split = pl.cdiv(num_tiles, num_splits)
    hw_pad = num_splits * tiles_per_split * tile_hw
    s_total, s_tile = hw_pad // _LANES, tile_hw // _LANES

    x = logits.reshape(N, C, HW).astype(compute_dtype)
    t = target.reshape(N, HW).astype(t_dtype)
    if hw_pad != HW:
        # Padded logits are 0 and padded labels are -1 -> their one-hot is 0 and their
        # softmax/sigmoid contribution to the cardinality is a known constant that we
        # subtract analytically below (no per-step mask in the kernel).
        x = jnp.pad(x, ((0, 0), (0, 0), (0, hw_pad - HW)))
        t = jnp.pad(t, ((0, 0), (0, hw_pad - HW)), constant_values=-1)
    x = x.reshape(N, C, s_total, _LANES)  # pixels on (sublane, lane): dense vregs for any C
    t = t.reshape(N, s_total, _LANES)

    tps = tiles_per_split
    kernel = functools.partial(_dice_sums_kernel, num_classes=C, approx_recip=approx_recip)
    out_sds = jax.ShapeDtypeStruct((N, num_splits, C, _LANES), jnp.float32)

    inter_p, card_p = pl.pallas_call(
        kernel,
        out_shape=(out_sds, out_sds),
        grid_spec=pltpu.PrefetchScalarGridSpec(
            num_scalar_prefetch=0,
            grid=(N, num_splits, tiles_per_split),
            in_specs=[
                pl.BlockSpec((None, C, s_tile, _LANES),
                             lambda n, s, j: (n, 0, s * tps + j, 0)),
                pl.BlockSpec((None, s_tile, _LANES),
                             lambda n, s, j: (n, s * tps + j, 0)),
            ],
            out_specs=(
                pl.BlockSpec((None, None, C, _LANES), lambda n, s, j: (n, s, 0, 0)),
                pl.BlockSpec((None, None, C, _LANES), lambda n, s, j: (n, s, 0, 0)),
            ),
        ),
        compiler_params=pltpu.CompilerParams(
            dimension_semantics=("parallel", "parallel", "arbitrary"),
            # Big tiles exceed v5e's ~16 MiB default scoped VMEM; 48 MiB still fits
            # comfortably under v7x's 64 MiB physical VMEM.
            vmem_limit_bytes=48 * 1024 * 1024,
        ),
    )(x, t)

    # ---- tiny final math in plain JAX --------------------------------------------------
    inter = jnp.sum(inter_p, axis=(0, 1, 3))                  # (C,)
    card = jnp.sum(card_p, axis=(0, 1, 3))                    # (C,)
    pad = hw_pad - HW
    if pad:
        pad_prob = 0.5 if C == 1 else 1.0 / C                 # sigmoid(0) / softmax of zeros
        card = card - float(N * pad) * pad_prob
    dice = (2.0 * inter + float(smooth)) / (card + float(smooth))
    loss = 1.0 - dice
    if reduction == "mean":
        return jnp.mean(loss)
    if reduction == "sum":
        return jnp.sum(loss)
    return loss  # 'none': per-class dice loss


def dice_loss_ref(logits, target, *, smooth=1.0, reduction="mean"):
    """Pure-JAX reference mirroring the PyTorch module."""
    C = logits.shape[1]
    p = jax.nn.sigmoid(logits) if C == 1 else jax.nn.softmax(logits, axis=1)
    onehot = jax.nn.one_hot(target, C, axis=1, dtype=p.dtype)  # (N, C, H, W)
    dims = (0, 2, 3)
    inter = jnp.sum(p * onehot, axis=dims)
    card = jnp.sum(p + onehot, axis=dims)
    loss = 1.0 - (2.0 * inter + smooth) / (card + smooth)
    if reduction == "mean":
        return jnp.mean(loss)
    if reduction == "sum":
        return jnp.sum(loss)
    return loss


if __name__ == "__main__":
    key = jax.random.PRNGKey(0)
    k1, k2 = jax.random.split(key)

    N, C, H, W = 2, 4, 16, 16
    logits = jax.random.normal(k1, (N, C, H, W), dtype=jnp.float32)
    target = jax.random.randint(k2, (N, H, W), 0, C, dtype=jnp.int32)
    ref = dice_loss_ref(logits, target)

    # Fast default path: bf16 logits stream + approx reciprocal (looser tolerance).
    out_fast = jax.block_until_ready(dice_loss(logits, target))
    assert np.allclose(np.asarray(out_fast), np.asarray(ref), rtol=5e-3, atol=5e-3), (out_fast, ref)

    # Bit-accurate path: f32 stream + exact reciprocal (also exercises the analytic
    # padding correction, since HW=256 is padded up to the 4096-lane tile granule).
    out_exact = jax.block_until_ready(
        dice_loss(logits, target, compute_dtype=jnp.float32, approx_recip=False))
    assert np.allclose(np.asarray(out_exact), np.asarray(ref), rtol=1e-5, atol=1e-5), (out_exact, ref)

    # Non-multiple-of-128 spatial size.
    H2, W2 = 15, 13
    logits2 = jax.random.normal(k1, (N, C, H2, W2), dtype=jnp.float32)
    target2 = jax.random.randint(k2, (N, H2, W2), 0, C, dtype=jnp.int32)
    out2 = jax.block_until_ready(
        dice_loss(logits2, target2, compute_dtype=jnp.float32, approx_recip=False))
    ref2 = dice_loss_ref(logits2, target2)
    assert np.allclose(np.asarray(out2), np.asarray(ref2), rtol=1e-5, atol=1e-5), (out2, ref2)

    # Single-channel (sigmoid) path; target must be all zeros to be a valid one-hot index.
    logits3 = jax.random.normal(k1, (N, 1, 8, 8), dtype=jnp.float32)
    target3 = jnp.zeros((N, 8, 8), dtype=jnp.int32)
    out3 = jax.block_until_ready(
        dice_loss(logits3, target3, compute_dtype=jnp.float32, approx_recip=False))
    ref3 = dice_loss_ref(logits3, target3)
    assert np.allclose(np.asarray(out3), np.asarray(ref3), rtol=1e-5, atol=1e-5), (out3, ref3)

    print("KERNEL_OK")
</pallas_src>

<mosaic_0001>
module attributes {stable_mosaic.version = 11 : i64} {
  func.func @_dice_sums_kernel(%arg0: i32, %arg1: i32, %arg2: i32, %arg3: memref<1x4x32x128xbf16, #tpu.memory_space<vmem>>, %arg4: memref<1x32x128xi8, #tpu.memory_space<vmem>>, %arg5: memref<1x1x4x128xf32, #tpu.memory_space<vmem>>, %arg6: memref<1x1x4x128xf32, #tpu.memory_space<vmem>>) attributes {dimension_semantics = [#tpu.dimension_semantics<parallel>, #tpu.dimension_semantics<parallel>, #tpu.dimension_semantics<arbitrary>], iteration_bounds = array<i64: 2, 1, 1>, scalar_prefetch = 0 : i64, scratch_operands = 0 : i64, tpu.core_type = #tpu.core_type<tc>, window_params = [{transform_indices = @transform_0, window_bounds = array<i64: 1, 4, 32, 128>}, {transform_indices = @transform_1, window_bounds = array<i64: 1, 32, 128>}, {transform_indices = @transform_2, window_bounds = array<i64: 1, 1, 4, 128>}, {transform_indices = @transform_3, window_bounds = array<i64: 1, 1, 4, 128>}]} {
    %c0_i32 = arith.constant 0 : i32
    %0 = arith.cmpi eq, %arg2, %c0_i32 : i32
    %1 = arith.extui %0 : i1 to i32
    %c0_i32_0 = arith.constant 0 : i32
    %2 = arith.cmpi ne, %1, %c0_i32_0 : i32
    scf.if %2 {
      %cst_28 = arith.constant 0.000000e+00 : f32
      %42 = vector.broadcast %cst_28 : f32 to vector<4x128xf32>
      %c0_29 = arith.constant 0 : index
      %c0_30 = arith.constant 0 : index
      %c0_31 = arith.constant 0 : index
      %c0_32 = arith.constant 0 : index
      %43 = vector.load %arg5[%c0_29, %c0_30, %c0_31, %c0_32] : memref<1x1x4x128xf32, #tpu.memory_space<vmem>>, vector<1x1x4x128xf32>
      %44 = vector.shape_cast %43 : vector<1x1x4x128xf32> to vector<4x128xf32>
      %45 = vector.shape_cast %42 : vector<4x128xf32> to vector<1x1x4x128xf32>
      tpu.vector_store %arg5[%c0_29, %c0_30, %c0_31, %c0_32], %45 {strides = array<i32>} : memref<1x1x4x128xf32, #tpu.memory_space<vmem>>, vector<1x1x4x128xf32>,
      %cst_33 = arith.constant 0.000000e+00 : f32
      %46 = vector.broadcast %cst_33 : f32 to vector<4x128xf32>
      %c0_34 = arith.constant 0 : index
      %c0_35 = arith.constant 0 : index
      %c0_36 = arith.constant 0 : index
      %c0_37 = arith.constant 0 : index
      %47 = vector.load %arg6[%c0_34, %c0_35, %c0_36, %c0_37] : memref<1x1x4x128xf32, #tpu.memory_space<vmem>>, vector<1x1x4x128xf32>
      %48 = vector.shape_cast %47 : vector<1x1x4x128xf32> to vector<4x128xf32>
      %49 = vector.shape_cast %46 : vector<4x128xf32> to vector<1x1x4x128xf32>
      tpu.vector_store %arg6[%c0_34, %c0_35, %c0_36, %c0_37], %49 {strides = array<i32>} : memref<1x1x4x128xf32, #tpu.memory_space<vmem>>, vector<1x1x4x128xf32>,
    } else {
    }
    %c0 = arith.constant 0 : index
    %c0_1 = arith.constant 0 : index
    %c0_2 = arith.constant 0 : index
    %c0_3 = arith.constant 0 : index
    %3 = vector.load %arg3[%c0, %c0_1, %c0_2, %c0_3] : memref<1x4x32x128xbf16, #tpu.memory_space<vmem>>, vector<1x4x32x128xbf16>
    %4 = vector.shape_cast %3 : vector<1x4x32x128xbf16> to vector<4x32x128xbf16>
    %5 = arith.extf %4 : vector<4x32x128xbf16> to vector<4x32x128xf32>
    %cst = arith.constant dense<0xFF800000> : vector<32x128xf32>
    %6 = vector.multi_reduction <maximumf>, %5, %cst [0] : vector<4x32x128xf32> to vector<32x128xf32>
    %7 = vector.shape_cast %6 : vector<32x128xf32> to vector<1x32x128xf32>
    %8 = vector.broadcast %7 : vector<1x32x128xf32> to vector<4x32x128xf32>
    %9 = arith.subf %5, %8 : vector<4x32x128xf32>
    %10 = math.exp %9 : vector<4x32x128xf32>
    %cst_4 = arith.constant dense<0.000000e+00> : vector<32x128xf32>
    %11 = vector.multi_reduction <add>, %10, %cst_4 [0] : vector<4x32x128xf32> to vector<32x128xf32>
    %12 = vector.shape_cast %11 : vector<32x128xf32> to vector<1x32x128xf32>
    %13 = tpu.reciprocal %12 {approx = true} : vector<1x32x128xf32> -> vector<1x32x128xf32>
    %14 = vector.broadcast %13 : vector<1x32x128xf32> to vector<4x32x128xf32>
    %15 = arith.mulf %10, %14 : vector<4x32x128xf32>
    %c0_5 = arith.constant 0 : index
    %c0_6 = arith.constant 0 : index
    %c0_7 = arith.constant 0 : index
    %16 = vector.load %arg4[%c0_5, %c0_6, %c0_7] : memref<1x32x128xi8, #tpu.memory_space<vmem>>, vector<1x32x128xi8>
    %17 = vector.shape_cast %16 : vector<1x32x128xi8> to vector<32x128xi8>
    %18 = arith.extsi %17 : vector<32x128xi8> to vector<32x128xi32>
    %19 = tpu.iota {dimensions = array<i32: 0>} : vector<4x32x128xi32>
    %20 = vector.shape_cast %18 : vector<32x128xi32> to vector<1x32x128xi32>
    %21 = vector.broadcast %20 : vector<1x32x128xi32> to vector<4x32x128xi32>
    %22 = arith.cmpi eq, %19, %21 : vector<4x32x128xi32>
    %c0_8 = arith.constant 0 : index
    %c0_9 = arith.constant 0 : index
    %c0_10 = arith.constant 0 : index
    %c0_11 = arith.constant 0 : index
    %23 = vector.load %arg5[%c0_8, %c0_9, %c0_10, %c0_11] : memref<1x1x4x128xf32, #tpu.memory_space<vmem>>, vector<1x1x4x128xf32>
    %24 = vector.shape_cast %23 : vector<1x1x4x128xf32> to vector<4x128xf32>
    %cst_12 = arith.constant 0.000000e+00 : f32
    %25 = vector.broadcast %cst_12 : f32 to vector<4x32x128xf32>
    %26 = arith.select %22, %15, %25 : vector<4x32x128xi1>, vector<4x32x128xf32>
    %cst_13 = arith.constant dense<0.000000e+00> : vector<4x128xf32>
    %27 = vector.multi_reduction <add>, %26, %cst_13 [1] : vector<4x32x128xf32> to vector<4x128xf32>
    %28 = arith.addf %24, %27 : vector<4x128xf32>
    %c0_14 = arith.constant 0 : index
    %c0_15 = arith.constant 0 : index
    %c0_16 = arith.constant 0 : index
    %c0_17 = arith.constant 0 : index
    %29 = vector.load %arg5[%c0_14, %c0_15, %c0_16, %c0_17] : memref<1x1x4x128xf32, #tpu.memory_space<vmem>>, vector<1x1x4x128xf32>
    %30 = vector.shape_cast %29 : vector<1x1x4x128xf32> to vector<4x128xf32>
    %31 = vector.shape_cast %28 : vector<4x128xf32> to vector<1x1x4x128xf32>
    tpu.vector_store %arg5[%c0_14, %c0_15, %c0_16, %c0_17], %31 {strides = array<i32>} : memref<1x1x4x128xf32, #tpu.memory_space<vmem>>, vector<1x1x4x128xf32>,
    %c0_18 = arith.constant 0 : index
    %c0_19 = arith.constant 0 : index
    %c0_20 = arith.constant 0 : index
    %c0_21 = arith.constant 0 : index
    %32 = vector.load %arg6[%c0_18, %c0_19, %c0_20, %c0_21] : memref<1x1x4x128xf32, #tpu.memory_space<vmem>>, vector<1x1x4x128xf32>
    %33 = vector.shape_cast %32 : vector<1x1x4x128xf32> to vector<4x128xf32>
    %cst_22 = arith.constant 1.000000e+00 : f32
    %34 = vector.broadcast %cst_22 : f32 to vector<4x32x128xf32>
    %35 = arith.addf %15, %34 : vector<4x32x128xf32>
    %36 = arith.select %22, %35, %15 : vector<4x32x128xi1>, vector<4x32x128xf32>
    %cst_23 = arith.constant dense<0.000000e+00> : vector<4x128xf32>
    %37 = vector.multi_reduction <add>, %36, %cst_23 [1] : vector<4x32x128xf32> to vector<4x128xf32>
    %38 = arith.addf %33, %37 : vector<4x128xf32>
    %c0_24 = arith.constant 0 : index
    %c0_25 = arith.constant 0 : index
    %c0_26 = arith.constant 0 : index
    %c0_27 = arith.constant 0 : index
    %39 = vector.load %arg6[%c0_24, %c0_25, %c0_26, %c0_27] : memref<1x1x4x128xf32, #tpu.memory_space<vmem>>, vector<1x1x4x128xf32>
    %40 = vector.shape_cast %39 : vector<1x1x4x128xf32> to vector<4x128xf32>
    %41 = vector.shape_cast %38 : vector<4x128xf32> to vector<1x1x4x128xf32>
    tpu.vector_store %arg6[%c0_24, %c0_25, %c0_26, %c0_27], %41 {strides = array<i32>} : memref<1x1x4x128xf32, #tpu.memory_space<vmem>>, vector<1x1x4x128xf32>,
    return
  }
  func.func @transform_0(%arg0: i32, %arg1: i32, %arg2: i32) -> (i32, i32, i32, i32) {
    %c1_i32 = arith.constant 1 : i32
    %0 = arith.muli %arg1, %c1_i32 : i32
    %1 = arith.addi %0, %arg2 : i32
    %c0_i32 = arith.constant 0 : i32
    %c0_i32_0 = arith.constant 0 : i32
    %c0_i32_1 = arith.constant 0 : i32
    return %arg0, %c0_i32, %1, %c0_i32_0 : i32, i32, i32, i32
  }
  func.func @transform_1(%arg0: i32, %arg1: i32, %arg2: i32) -> (i32, i32, i32) {
    %c1_i32 = arith.constant 1 : i32
    %0 = arith.muli %arg1, %c1_i32 : i32
    %1 = arith.addi %0, %arg2 : i32
    %c0_i32 = arith.constant 0 : i32
    %c0_i32_0 = arith.constant 0 : i32
    return %arg0, %1, %c0_i32 : i32, i32, i32
  }
  func.func @transform_2(%arg0: i32, %arg1: i32, %arg2: i32) -> (i32, i32, i32, i32) {
    %c0_i32 = arith.constant 0 : i32
    %c0_i32_0 = arith.constant 0 : i32
    %c0_i32_1 = arith.constant 0 : i32
    return %arg0, %arg1, %c0_i32, %c0_i32_0 : i32, i32, i32, i32
  }
  func.func @transform_3(%arg0: i32, %arg1: i32, %arg2: i32) -> (i32, i32, i32, i32) {
    %c0_i32 = arith.constant 0 : i32
    %c0_i32_0 = arith.constant 0 : i32
    %c0_i32_1 = arith.constant 0 : i32
    return %arg0, %arg1, %c0_i32, %c0_i32_0 : i32, i32, i32, i32
  }
}

</mosaic_0001>

<llo_original>
// kernel: tpu_custom_call.1
$region0: #{tpu_custom_call.1}
  #allocation0 [shape = 'u32[]', space=smem, size = 0x4, offset = 0x4, fixed_abs, tag = 'smem constant byte address 0x4 - core index']
  #allocation1 [shape = 'u32[72,128]{1,0:T(1,128)}', space=vmem, size = 0x9000, scoped, tag = 'internal scratch']
  %s0 = inlined_call_operand.hbm [shape: bf16[2,4,32,128], index: 0, kind: input, shape index: {}]
  %s1 = inlined_call_operand.hbm [shape: s8[2,32,128], index: 1, kind: input, shape index: {}]
  %s2 = inlined_call_operand.hbm [shape: f32[2,1,4,128], index: 2, kind: output, shape index: {0}]
  %s3 = inlined_call_operand.hbm [shape: f32[2,1,4,128], index: 3, kind: output, shape index: {1}]
  %4 = xla_tuple %s2, %s3
  %s5 = sld [smem:[#allocation0]]
  $region61: #{tpu_custom_call.1} parent=0
    _
  %s7 = ssub.s32 1, %s5
  %s8 = scalar_select 0, %s7, %s5
  $region1: #{tpu_custom_call.1} parent=0
    #allocation2 [shape = 'u8[65536]{0}', space=vmem, size = 0x10000, scoped, tag = 'input window, operand 0']
    #allocation3 [shape = 's32[2]{0}', space=sflag, size = 0x8, scoped, tag = 'scoped memory for tpu_custom_call.1']
    #allocation4 [shape = 's32[2]{0}', space=sflag, size = 0x8, scoped, tag = 'scoped memory for tpu_custom_call.1']
    #allocation5 [shape = 'u8[8192]{0}', space=vmem, size = 0x2000, scoped, tag = 'input window, operand 1']
    #allocation6 [shape = 's32[2]{0}', space=sflag, size = 0x8, scoped, tag = 'scoped memory for tpu_custom_call.1']
    #allocation7 [shape = 'u8[4096]{0}', space=vmem, size = 0x1000, scoped, tag = 'output window, operand 0']
    #allocation8 [shape = 'u8[4096]{0}', space=vmem, size = 0x1000, scoped, tag = 'output window, operand 1']
    #allocation9 [shape = 's32[2]{0}', space=sflag, size = 0x8, scoped, tag = 'scoped memory for tpu_custom_call.1']
    %9 = vsyncpa [#allocation3], 0
    %s10 = scalar_lea.sflag [#allocation3], 1
    %11 = vsyncpa %s10, 0
    %12 = vsyncpa [#allocation6], 0
    %s13 = scalar_lea.sflag [#allocation6], 1
    %14 = vsyncpa %s13, 0
    %15 = vsyncpa [#allocation4], 0
    %s16 = scalar_lea.sflag [#allocation4], 1
    %17 = vsyncpa %s16, 0
    %18 = vsyncpa [#allocation9], 0
    %s19 = scalar_lea.sflag [#allocation9], 1
    %20 = vsyncpa %s19, 0
    loop: start=0, step=1, limit=4
    $region2: #{tpu_custom_call.1} parent=1 // loop_pre_header
      _
    $region3: #{tpu_custom_call.1} parent=1 // loop_header
      %s22 = sphi 0, %s26
      %p23 = scmp.ge.s32.totalorder %s22, 4
      %s29 = sphi 0, %s48
      %s30 = sphi 0, %s44
      %s31 = sphi 0, %s40
      %s32 = sphi 0, %s29
      %s33 = sphi 0, %s30
      %s34 = sphi 0, %s31
      %s35 = sphi 0, %s32
      %s36 = sphi 0, %s33
      %s37 = sphi 0, %s34
      %s55 = sphi 0, %s57
      %s58 = sphi 0, %s55
      %s59 = sphi 0, %s58
      %s75 = sphi 0, %s59
      %s85 = sphi 0, %s87
      %s88 = sphi 0, %s85
      %s89 = sphi 0, %s88
      %s105 = sphi 0, %s89
      %s113 = sphi 0, %s115
      %s116 = sphi 0, %s113
      %s117 = sphi 0, %s116
      %s133 = sphi 0, %s117
      %s141 = sphi 0, %s143
      %s144 = sphi 0, %s141
      %s145 = sphi 0, %s144
      %s161 = sphi 0, %s145
    $region4: #{tpu_custom_call.1} parent=1 // loop_header_branch
      %25 = sbr.rel (%p23) target = $region8
    $region5: #{tpu_custom_call.1} parent=1 // loop_body
      %s27 = ssub.s32 %s22, 1
      %s28 = ssub.s32 %s22, 2
      %s38 = sadd.s32 1, %s31
      %p39 = scmp.ge.s32.totalorder %s38, 1
      %s40 = scalar_select %p39, 0, %s38
      %s41 = sadd.s32 1, %s30
      %s42 = scalar_select %p39, %s41, %s30
      %p43 = scmp.ge.s32.totalorder %s42, 1
      %s44 = scalar_select %p43, 0, %s42
      %s45 = sadd.s32 1, %s29
      %s46 = scalar_select %p43, %s45, %s29
      %p47 = scmp.ge.s32.totalorder %s46, 2
      %s48 = scalar_select %p47, 0, %s46
      %s49 = sadd.s32 %s30, %s31
      %s50 = sadd.s32 %s44, %s40
      %s51 = ssub.s32 %s29, %s48
      %s52 = ssub.s32 %s49, %s50
      %s53 = sor.u32 %s51, %s52
      %p54 = scmp.eq.s32.totalorder %s53, 0
      %s56 = sadd.s32 %s55, 1
      %s57 = scalar_select %p54, %s55, %s56
      %p60 = pneg %p54
      %p61 = scmp.eq.s32.totalorder %s22, 1
      %p62 = por %p60, %p61
      %p63 = scmp.ne.s32.totalorder %s55, %s58
      %p64 = scmp.eq.s32.totalorder %s22, 0
      %p65 = por %p63, %p64
      %p66 = scmp.ne.s32.totalorder %s55, %s58
      %p67 = scmp.eq.s32.totalorder %s27, 1
      %p68 = por %p66, %p67
      %p69 = scmp.ne.s32.totalorder %s58, %s59
      %p70 = scmp.eq.s32.totalorder %s27, 0
      %p71 = por %p69, %p70
      %p72 = scmp.ne.s32.totalorder %s58, %s59
      %p73 = scmp.eq.s32.totalorder %s28, 1
      %p74 = por %p72, %p73
      %p76 = scmp.ne.s32.totalorder %s59, %s75
      %p77 = scmp.eq.s32.totalorder %s28, 0
      %p78 = por %p76, %p77
      %s79 = sadd.s32 %s30, %s31
      %s80 = sadd.s32 %s44, %s40
      %s81 = ssub.s32 %s29, %s48
      %s82 = ssub.s32 %s79, %s80
      %s83 = sor.u32 %s81, %s82
      %p84 = scmp.eq.s32.totalorder %s83, 0
      %s86 = sadd.s32 %s85, 1
      %s87 = scalar_select %p84, %s85, %s86
      %p90 = pneg %p84
      %p91 = scmp.eq.s32.totalorder %s22, 1
      %p92 = por %p90, %p91
      %p93 = scmp.ne.s32.totalorder %s85, %s88
      %p94 = scmp.eq.s32.totalorder %s22, 0
      %p95 = por %p93, %p94
      %p96 = scmp.ne.s32.totalorder %s85, %s88
      %p97 = scmp.eq.s32.totalorder %s27, 1
      %p98 = por %p96, %p97
      %p99 = scmp.ne.s32.totalorder %s88, %s89
      %p100 = scmp.eq.s32.totalorder %s27, 0
      %p101 = por %p99, %p100
      %p102 = scmp.ne.s32.totalorder %s88, %s89
      %p103 = scmp.eq.s32.totalorder %s28, 1
      %p104 = por %p102, %p103
      %p106 = scmp.ne.s32.totalorder %s89, %s105
      %p107 = scmp.eq.s32.totalorder %s28, 0
      %p108 = por %p106, %p107
      %s109 = ssub.s32 %s29, %s48
      %s110 = ssub.s32 %s30, %s44
      %s111 = sor.u32 %s109, %s110
      %p112 = scmp.eq.s32.totalorder %s111, 0
      %s114 = sadd.s32 %s113, 1
      %s115 = scalar_select %p112, %s113, %s114
      %p118 = pneg %p112
      %p119 = scmp.eq.s32.totalorder %s22, 1
      %p120 = por %p118, %p119
      %p121 = scmp.ne.s32.totalorder %s113, %s116
      %p122 = scmp.eq.s32.totalorder %s22, 0
      %p123 = por %p121, %p122
      %p124 = scmp.ne.s32.totalorder %s113, %s116
      %p125 = scmp.eq.s32.totalorder %s27, 1
      %p126 = por %p124, %p125
      %p127 = scmp.ne.s32.totalorder %s116, %s117
      %p128 = scmp.eq.s32.totalorder %s27, 0
      %p129 = por %p127, %p128
      %p130 = scmp.ne.s32.totalorder %s116, %s117
      %p131 = scmp.eq.s32.totalorder %s28, 1
      %p132 = por %p130, %p131
      %p134 = scmp.ne.s32.totalorder %s117, %s133
      %p135 = scmp.eq.s32.totalorder %s28, 0
      %p136 = por %p134, %p135
      %s137 = ssub.s32 %s29, %s48
      %s138 = ssub.s32 %s30, %s44
      %s139 = sor.u32 %s137, %s138
      %p140 = scmp.eq.s32.totalorder %s139, 0
      %s142 = sadd.s32 %s141, 1
      %s143 = scalar_select %p140, %s141, %s142
      %p146 = pneg %p140
      %p147 = scmp.eq.s32.totalorder %s22, 1
      %p148 = por %p146, %p147
      %p149 = scmp.ne.s32.totalorder %s141, %s144
      %p150 = scmp.eq.s32.totalorder %s22, 0
      %p151 = por %p149, %p150
      %p152 = scmp.ne.s32.totalorder %s141, %s144
      %p153 = scmp.eq.s32.totalorder %s27, 1
      %p154 = por %p152, %p153
      %p155 = scmp.ne.s32.totalorder %s144, %s145
      %p156 = scmp.eq.s32.totalorder %s27, 0
      %p157 = por %p155, %p156
      %p158 = scmp.ne.s32.totalorder %s144, %s145
      %p159 = scmp.eq.s32.totalorder %s28, 1
      %p160 = por %p158, %p159
      %p162 = scmp.ne.s32.totalorder %s145, %s161
      %p163 = scmp.eq.s32.totalorder %s28, 0
      %p164 = por %p162, %p163
      %p165 = scmp.le.s32.totalorder 1, %s22
      %p166 = scmp.lt.s32.totalorder %s22, 3
      %p167 = pnand %p165, %p166
      %p168 = pneg %p167
      // Predicated region
      $region9: #{tpu_custom_call.1} parent=5 // pred_check
        _
      $region10: #{tpu_custom_call.1} parent=5 // pred_check_branch
        %170 = sbr.rel (%p167) target = $region12
      $region11: #{tpu_custom_call.1} parent=5 // pred_region
        %s171 = ssub.s32 %s22, 1
      $region12: #{tpu_custom_call.1} parent=5 // pred_fallthru
        _
      %p172 = scmp.lt.s32.totalorder %s22, 2
      // Predicated region
      $region13: #{tpu_custom_call.1} parent=5 // pred_check
        %p173 = pneg %p172
      $region14: #{tpu_custom_call.1} parent=5 // pred_check_branch
        %175 = sbr.rel (%p173) target = $region16
      $region15: #{tpu_custom_call.1} parent=5 // pred_region
        // Predicated region
        $region17: #{tpu_custom_call.1} parent=15 // pred_check
          %p176 = pneg %p65
        $region18: #{tpu_custom_call.1} parent=15 // pred_check_branch
          %178 = sbr.rel (%p176) target = $region20
        $region19: #{tpu_custom_call.1} parent=15 // pred_region
          %s179 = sand.u32 %s55, 1
          %s180 = scalar_lea.sflag [#allocation3], %s179
          %s181 = sand.u32 %s55, 1
          %s182 = smul.addr %s181, 64
          %s183 = scalar_lea.vmem [#allocation2], %s182
          %s184 = sadd.s32 %s30, %s31
          %s185 = smul.u32 4, %s184
          %187 = vsyncadd %s180, 0
          %s188 = smul.addr %s29, 16
          %s189 = sadd.s32 %s185, %s188
          %s190 = smul.addr %s189, 4
          %s191 = scalar_lea.hbm %s0, %s190
          %s192 = sshll.u32 %s191, 4
          %s193 = int_to_ptr.hbm [resolvable:$true] %s192
          %s194 = sshll.u32 %s183, 4
          %s195 = int_to_ptr.vmem [resolvable:$true] %s194
          %200 = dma.hbm_to_vmem [thread:$0]  %s193, 1024, %s195, %s180, 64, 64, 4
        $region20: #{tpu_custom_call.1} parent=15 // pred_fallthru
          _
        // Predicated region
        $region21: #{tpu_custom_call.1} parent=15 // pred_check
          %p201 = pneg %p95
        $region22: #{tpu_custom_call.1} parent=15 // pred_check_branch
          %203 = sbr.rel (%p201) target = $region24
        $region23: #{tpu_custom_call.1} parent=15 // pred_region
          %s204 = sand.u32 %s85, 1
          %s205 = scalar_lea.sflag [#allocation6], %s204
          %s206 = sand.u32 %s85, 1
          %s207 = smul.addr %s206, 8
          %s208 = scalar_lea.vmem [#allocation5], %s207
          %s209 = sadd.s32 %s30, %s31
          %211 = vsyncadd %s205, 0
          %s212 = sadd.s32 %s209, %s29
          %s213 = smul.addr %s212, 8
          %s214 = scalar_lea.hbm %s1, %s213
          %s216 = sshll.u32 %s214, 4
          %s217 = int_to_ptr.hbm [resolvable:$true] %s216
          %s218 = sshll.u32 %s208, 4
          %s219 = int_to_ptr.vmem [resolvable:$true] %s218
          %221 = dma.hbm_to_vmem [thread:$0]  %s217, 128, %s219, %s205
        $region24: #{tpu_custom_call.1} parent=15 // pred_fallthru
          _
      $region16: #{tpu_custom_call.1} parent=5 // pred_fallthru
        _
      %p222 = scmp.le.s32.totalorder 1, %s22
      %p223 = scmp.lt.s32.totalorder %s22, 3
      %p224 = pnand %p222, %p223
      %p225 = pneg %p224
      // Predicated region
      $region25: #{tpu_custom_call.1} parent=5 // pred_check
        _
      $region26: #{tpu_custom_call.1} parent=5 // pred_check_branch
        %227 = sbr.rel (%p224) target = $region28
      $region27: #{tpu_custom_call.1} parent=5 // pred_region
        %s228 = ssub.s32 %s22, 1
        %s229 = sand.u32 %s58, 1
        %s230 = scalar_lea.sflag [#allocation3], %s229
        %s231 = sand.u32 %s58, 1
        %s232 = smul.addr %s231, 64
        %s233 = scalar_lea.vmem [#allocation2], %s232
        // Predicated region
        $region29: #{tpu_custom_call.1} parent=27 // pred_check
          %p234 = pneg %p71
        $region30: #{tpu_custom_call.1} parent=27 // pred_check_branch
          %236 = sbr.rel (%p234) target = $region32
        $region31: #{tpu_custom_call.1} parent=27 // pred_region
          %238 = dma.done %s230, 1024
        $region32: #{tpu_custom_call.1} parent=27 // pred_fallthru
          _
        %s239 = sand.u32 %s88, 1
        %s240 = scalar_lea.sflag [#allocation6], %s239
        %s241 = sand.u32 %s88, 1
        %s242 = smul.addr %s241, 8
        %s243 = scalar_lea.vmem [#allocation5], %s242
        // Predicated region
        $region33: #{tpu_custom_call.1} parent=27 // pred_check
          %p244 = pneg %p101
        $region34: #{tpu_custom_call.1} parent=27 // pred_check_branch
          %246 = sbr.rel (%p244) target = $region36
        $region35: #{tpu_custom_call.1} parent=27 // pred_region
          %248 = dma.done %s240, 128
        $region36: #{tpu_custom_call.1} parent=27 // pred_fallthru
          _
        %s249 = sand.u32 %s58, 1
        %s250 = scalar_lea.sflag [#allocation3], %s249
        %s251 = sand.u32 %s58, 1
        %s252 = smul.addr %s251, 64
        %s253 = scalar_lea.vmem [#allocation2], %s252
        %p254 = pneg %p71
        %p255 = pneg %p68
        %s256 = sand.u32 %s88, 1
        %s257 = scalar_lea.sflag [#allocation6], %s256
        %s258 = sand.u32 %s88, 1
        %s259 = smul.addr %s258, 8
        %s260 = scalar_lea.vmem [#allocation5], %s259
        %p261 = pneg %p101
        %p262 = pneg %p98
        %p263 = pneg %p129
        %p264 = pneg %p126
        %s265 = sand.u32 %s116, 1
        %s266 = scalar_lea.sflag [#allocation4], %s265
        %s267 = sand.u32 %s116, 1
        %s268 = smul.addr %s267, 4
        %s269 = scalar_lea.vmem [#allocation7], %s268
        %p270 = pneg %p157
        %p271 = pneg %p154
        %s272 = sand.u32 %s144, 1
        %s273 = scalar_lea.sflag [#allocation9], %s272
        %s274 = sand.u32 %s144, 1
        %s275 = smul.addr %s274, 4
        %s276 = scalar_lea.vmem [#allocation8], %s275
        %s277 = sadd.s32 %s33, %s34
        %s278 = smul.u32 4, %s277
        %s279 = sadd.s32 %s33, %s34
        %p280 = scmp.eq.s32.totalorder %s34, 0
        // Predicated region
        $region37: #{tpu_custom_call.1} parent=27 // pred_check
          %p281 = pneg %p280
        $region38: #{tpu_custom_call.1} parent=27 // pred_check_branch
          %283 = sbr.rel (%p281) target = $region40
        $region39: #{tpu_custom_call.1} parent=27 // pred_region
          %284 = vst [vmem:[%s269] sm:$0xf] 0.0
          %285 = vst [vmem:[%s276] sm:$0xf] 0.0
        $region40: #{tpu_custom_call.1} parent=27 // pred_fallthru
          _
        %v286 = vld [vmem:[%s233] sm:$0xf]
        %v287 = vld [vmem:[%s233 + $0x4] sm:$0xf]
        %v288 = vld [vmem:[%s233 + $0x8] sm:$0xf]
        %v289 = vld [vmem:[%s233 + $0xc] sm:$0xf]
        %v290 = vld [vmem:[%s233 + $0x10] sm:$0xf]
        %v291 = vld [vmem:[%s233 + $0x14] sm:$0xf]
        %v292 = vld [vmem:[%s233 + $0x18] sm:$0xf]
        %v293 = vld [vmem:[%s233 + $0x1c] sm:$0xf]
        %v294 = vld [vmem:[%s233 + $0x20] sm:$0xf]
        %v295 = vld [vmem:[%s233 + $0x24] sm:$0xf]
        %v296 = vld [vmem:[%s233 + $0x28] sm:$0xf]
        %v297 = vld [vmem:[%s233 + $0x2c] sm:$0xf]
        %v298 = vld [vmem:[%s233 + $0x30] sm:$0xf]
        %v299 = vld [vmem:[%s233 + $0x34] sm:$0xf]
        %v300 = vld [vmem:[%s233 + $0x38] sm:$0xf]
        %v301 = vld [vmem:[%s233 + $0x3c] sm:$0xf]
        %v302 = vunpack.c.l.bf16 %v286
        %v303 = vunpack.c.l.bf16 %v287
        %v304 = vunpack.c.l.bf16 %v288
        %v305 = vunpack.c.l.bf16 %v289
        %v306 = vunpack.c.l.bf16 %v290
        %v307 = vunpack.c.l.bf16 %v291
        %v308 = vunpack.c.l.bf16 %v292
        %v309 = vunpack.c.l.bf16 %v293
        %v310 = vunpack.c.l.bf16 %v294
        %v311 = vunpack.c.l.bf16 %v295
        %v312 = vunpack.c.l.bf16 %v296
        %v313 = vunpack.c.l.bf16 %v297
        %v314 = vunpack.c.l.bf16 %v298
        %v315 = vunpack.c.l.bf16 %v299
        %v316 = vunpack.c.l.bf16 %v300
        %v317 = vunpack.c.l.bf16 %v301
        %v318 = vmax.f32 %v302, %v306
        %v319 = vmax.f32 %v318, %v310
        %v320 = vmax.f32 %v319, %v314
        %v321 = vmax.f32 %v303, %v307
        %v322 = vmax.f32 %v321, %v311
        %v323 = vmax.f32 %v322, %v315
        %v324 = vmax.f32 %v304, %v308
        %v325 = vmax.f32 %v324, %v312
        %v326 = vmax.f32 %v325, %v316
        %v327 = vmax.f32 %v305, %v309
        %v328 = vmax.f32 %v327, %v313
        %v329 = vmax.f32 %v328, %v317
        %v330 = vsub.f32 %v302, %v320
        %v331 = vsub.f32 %v303, %v323
        %v332 = vsub.f32 %v304, %v326
        %v333 = vsub.f32 %v305, %v329
        %v334 = vsub.f32 %v306, %v320
        %v335 = vsub.f32 %v307, %v323
        %v336 = vsub.f32 %v308, %v326
        %v337 = vsub.f32 %v309, %v329
        %v338 = vsub.f32 %v310, %v320
        %v339 = vsub.f32 %v311, %v323
        %v340 = vsub.f32 %v312, %v326
        %v341 = vsub.f32 %v313, %v329
        %v342 = vsub.f32 %v314, %v320
        %v343 = vsub.f32 %v315, %v323
        %v344 = vsub.f32 %v316, %v326
        %v345 = vsub.f32 %v317, %v329
        %v346 = vmul.f32 %v330, 1.442695
        %v347 = vpow.pop %v346
        %v348 = vmul.f32 %v331, 1.442695
        %v349 = vpow.pop %v348
        %v350 = vmul.f32 %v332, 1.442695
        %v351 = vpow.pop %v350
        %v352 = vmul.f32 %v333, 1.442695
        %v353 = vpow.pop %v352
        %v354 = vmul.f32 %v334, 1.442695
        %v355 = vpow.pop %v354
        %v356 = vmul.f32 %v335, 1.442695
        %v357 = vpow.pop %v356
        %v358 = vmul.f32 %v336, 1.442695
        %v359 = vpow.pop %v358
        %v360 = vmul.f32 %v337, 1.442695
        %v361 = vpow.pop %v360
        %v362 = vmul.f32 %v338, 1.442695
        %v363 = vpow.pop %v362
        %v364 = vmul.f32 %v339, 1.442695
        %v365 = vpow.pop %v364
        %v366 = vmul.f32 %v340, 1.442695
        %v367 = vpow.pop %v366
        %v368 = vmul.f32 %v341, 1.442695
        %v369 = vpow.pop %v368
        %v370 = vmul.f32 %v342, 1.442695
        %v371 = vpow.pop %v370
        %v372 = vmul.f32 %v343, 1.442695
        %v373 = vpow.pop %v372
        %v374 = vmul.f32 %v344, 1.442695
        %v375 = vpow.pop %v374
        %v376 = vmul.f32 %v345, 1.442695
        %v377 = vpow.pop %v376
        %v378 = vadd.f32 %v347, %v355
        %v379 = vadd.f32 %v378, %v363
        %v380 = vadd.f32 %v379, %v371
        %v381 = vadd.f32 %v349, %v357
        %v382 = vadd.f32 %v381, %v365
        %v383 = vadd.f32 %v382, %v373
        %v384 = vadd.f32 %v351, %v359
        %v385 = vadd.f32 %v384, %v367
        %v386 = vadd.f32 %v385, %v375
        %v387 = vadd.f32 %v353, %v361
        %v388 = vadd.f32 %v387, %v369
        %v389 = vadd.f32 %v388, %v377
        %v390 = vrcp.pop %v380
        %v391 = vrcp.pop %v383
        %v392 = vrcp.pop %v386
        %v393 = vrcp.pop %v389
        %v394 = vmul.f32 %v347, %v390
        %v395 = vmul.f32 %v349, %v391
        %v396 = vmul.f32 %v351, %v392
        %v397 = vmul.f32 %v353, %v393
        %v398 = vmul.f32 %v355, %v390
        %v399 = vmul.f32 %v357, %v391
        %v400 = vmul.f32 %v359, %v392
        %v401 = vmul.f32 %v361, %v393
        %v402 = vmul.f32 %v363, %v390
        %v403 = vmul.f32 %v365, %v391
        %v404 = vmul.f32 %v367, %v392
        %v405 = vmul.f32 %v369, %v393
        %v406 = vmul.f32 %v371, %v390
        %v407 = vmul.f32 %v373, %v391
        %v408 = vmul.f32 %v375, %v392
        %v409 = vmul.f32 %v377, %v393
        %v410 = vld [vmem:[%s243] sm:$0xff]
        %v411 = vunpack.c.0.s8 %v410
        %v412 = vunpack.c.1.s8 %v410
        %v413 = vunpack.c.2.s8 %v410
        %v414 = vunpack.c.3.s8 %v410
        %vm415 = vcmp.eq.s32.totalorder %v411, 0
        %vm416 = vcmp.eq.s32.totalorder %v412, 0
        %vm417 = vcmp.eq.s32.totalorder %v413, 0
        %vm418 = vcmp.eq.s32.totalorder %v414, 0
        %vm419 = vcmp.eq.s32.totalorder %v411, 1
        %vm420 = vcmp.eq.s32.totalorder %v412, 1
        %vm421 = vcmp.eq.s32.totalorder %v413, 1
        %vm422 = vcmp.eq.s32.totalorder %v414, 1
        %vm423 = vcmp.eq.s32.totalorder %v411, 2
        %vm424 = vcmp.eq.s32.totalorder %v412, 2
        %vm425 = vcmp.eq.s32.totalorder %v413, 2
        %vm426 = vcmp.eq.s32.totalorder %v414, 2
        %vm427 = vcmp.eq.s32.totalorder %v411, 3
        %vm428 = vcmp.eq.s32.totalorder %v412, 3
        %vm429 = vcmp.eq.s32.totalorder %v413, 3
        %vm430 = vcmp.eq.s32.totalorder %v414, 3
        %v431 = vld [vmem:[%s269] sm:$0xf]
        %v432 = vsel %vm415, %v394, 0.0
        %v433 = vsel %vm416, %v395, 0.0
        %v434 = vsel %vm417, %v396, 0.0
        %v435 = vsel %vm418, %v397, 0.0
        %v436 = vsel %vm419, %v398, 0.0
        %v437 = vsel %vm420, %v399, 0.0
        %v438 = vsel %vm421, %v400, 0.0
        %v439 = vsel %vm422, %v401, 0.0
        %v440 = vsel %vm423, %v402, 0.0
        %v441 = vsel %vm424, %v403, 0.0
        %v442 = vsel %vm425, %v404, 0.0
        %v443 = vsel %vm426, %v405, 0.0
        %v444 = vsel %vm427, %v406, 0.0
        %v445 = vsel %vm428, %v407, 0.0
        %v446 = vsel %vm429, %v408, 0.0
        %v447 = vsel %vm430, %v409, 0.0
        %v448 = vadd.f32 %v432, %v433
        %v449 = vadd.f32 %v448, %v434
        %v450 = vadd.f32 %v449, %v435
        %v451 = vrot.slane %v450, 4
        %v452 = vadd.f32 %v450, %v451
        %v453 = vrot.slane %v452, 2
        %v454 = vadd.f32 %v452, %v453
        %v455 = vrot.slane %v454, 1
        %v456 = vadd.f32 %v454, %v455
        %v457 = vadd.f32 %v436, %v437
        %v458 = vadd.f32 %v457, %v438
        %v459 = vadd.f32 %v458, %v439
        %v460 = vrot.slane %v459, 4
        %v461 = vadd.f32 %v459, %v460
        %v462 = vrot.slane %v461, 2
        %v463 = vadd.f32 %v461, %v462
        %v464 = vrot.slane %v463, 1
        %v465 = vadd.f32 %v463, %v464
        %v466 = vadd.f32 %v440, %v441
        %v467 = vadd.f32 %v466, %v442
        %v468 = vadd.f32 %v467, %v443
        %v469 = vrot.slane %v468, 4
        %v470 = vadd.f32 %v468, %v469
        %v471 = vrot.slane %v470, 2
        %v472 = vadd.f32 %v470, %v471
        %v473 = vrot.slane %v472, 1
        %v474 = vadd.f32 %v472, %v473
        %v475 = vadd.f32 %v444, %v445
        %v476 = vadd.f32 %v475, %v446
        %v477 = vadd.f32 %v476, %v447
        %v478 = vrot.slane %v477, 4
        %v479 = vadd.f32 %v477, %v478
        %v480 = vrot.slane %v479, 2
        %v481 = vadd.f32 %v479, %v480
        %v482 = vrot.slane %v481, 1
        %v483 = vadd.f32 %v481, %v482
        %vm488 = vcmask 1041409
        %v489 = vsel %vm488, %v465, %v456
        %vm490 = vcmask 1042434
        %v491 = vsel %vm490, %v474, %v489
        %vm492 = vcmask 1043459
        %v493 = vsel %vm492, %v483, %v491
        %v495 = vadd.f32 %v431, %v493
        %496 = vst [vmem:[%s269] sm:$0xf] %v495
        %v497 = vld [vmem:[%s276] sm:$0xf]
        %v498 = vadd.f32 %v394, 1.0
        %v499 = vadd.f32 %v395, 1.0
        %v500 = vadd.f32 %v396, 1.0
        %v501 = vadd.f32 %v397, 1.0
        %v502 = vadd.f32 %v398, 1.0
        %v503 = vadd.f32 %v399, 1.0
        %v504 = vadd.f32 %v400, 1.0
        %v505 = vadd.f32 %v401, 1.0
        %v506 = vadd.f32 %v402, 1.0
        %v507 = vadd.f32 %v403, 1.0
        %v508 = vadd.f32 %v404, 1.0
        %v509 = vadd.f32 %v405, 1.0
        %v510 = vadd.f32 %v406, 1.0
        %v511 = vadd.f32 %v407, 1.0
        %v512 = vadd.f32 %v408, 1.0
        %v513 = vadd.f32 %v409, 1.0
        %v514 = vsel %vm415, %v498, %v394
        %v515 = vsel %vm416, %v499, %v395
        %v516 = vsel %vm417, %v500, %v396
        %v517 = vsel %vm418, %v501, %v397
        %v518 = vsel %vm419, %v502, %v398
        %v519 = vsel %vm420, %v503, %v399
        %v520 = vsel %vm421, %v504, %v400
        %v521 = vsel %vm422, %v505, %v401
        %v522 = vsel %vm423, %v506, %v402
        %v523 = vsel %vm424, %v507, %v403
        %v524 = vsel %vm425, %v508, %v404
        %v525 = vsel %vm426, %v509, %v405
        %v526 = vsel %vm427, %v510, %v406
        %v527 = vsel %vm428, %v511, %v407
        %v528 = vsel %vm429, %v512, %v408
        %v529 = vsel %vm430, %v513, %v409
        %v530 = vadd.f32 %v514, %v515
        %v531 = vadd.f32 %v530, %v516
        %v532 = vadd.f32 %v531, %v517
        %v533 = vrot.slane %v532, 4
        %v534 = vadd.f32 %v532, %v533
        %v535 = vrot.slane %v534, 2
        %v536 = vadd.f32 %v534, %v535
        %v537 = vrot.slane %v536, 1
        %v538 = vadd.f32 %v536, %v537
        %v539 = vadd.f32 %v518, %v519
        %v540 = vadd.f32 %v539, %v520
        %v541 = vadd.f32 %v540, %v521
        %v542 = vrot.slane %v541, 4
        %v543 = vadd.f32 %v541, %v542
        %v544 = vrot.slane %v543, 2
        %v545 = vadd.f32 %v543, %v544
        %v546 = vrot.slane %v545, 1
        %v547 = vadd.f32 %v545, %v546
        %v548 = vadd.f32 %v522, %v523
        %v549 = vadd.f32 %v548, %v524
        %v550 = vadd.f32 %v549, %v525
        %v551 = vrot.slane %v550, 4
        %v552 = vadd.f32 %v550, %v551
        %v553 = vrot.slane %v552, 2
        %v554 = vadd.f32 %v552, %v553
        %v555 = vrot.slane %v554, 1
        %v556 = vadd.f32 %v554, %v555
        %v557 = vadd.f32 %v526, %v527
        %v558 = vadd.f32 %v557, %v528
        %v559 = vadd.f32 %v558, %v529
        %v560 = vrot.slane %v559, 4
        %v561 = vadd.f32 %v559, %v560
        %v562 = vrot.slane %v561, 2
        %v563 = vadd.f32 %v561, %v562
        %v564 = vrot.slane %v563, 1
        %v565 = vadd.f32 %v563, %v564
        %v570 = vsel %vm488, %v547, %v538
        %v571 = vsel %vm490, %v556, %v570
        %v572 = vsel %vm492, %v565, %v571
        %v574 = vadd.f32 %v497, %v572
        %575 = vst [vmem:[%s276] sm:$0xf] %v574
        %s576 = sand.u32 %s116, 1
        %s577 = scalar_lea.sflag [#allocation4], %s576
        %s578 = sand.u32 %s116, 1
        %s579 = smul.addr %s578, 4
        %s580 = scalar_lea.vmem [#allocation7], %s579
        %s581 = sand.u32 %s144, 1
        %s582 = scalar_lea.sflag [#allocation9], %s581
        %s583 = sand.u32 %s144, 1
        %s584 = smul.addr %s583, 4
        %s585 = scalar_lea.vmem [#allocation8], %s584
        // Predicated region
        $region41: #{tpu_custom_call.1} parent=27 // pred_check
          %p586 = pneg %p126
        $region42: #{tpu_custom_call.1} parent=27 // pred_check_branch
          %588 = sbr.rel (%p586) target = $region44
        $region43: #{tpu_custom_call.1} parent=27 // pred_region
          %590 = vsyncadd %s577, 0
          %s591 = sadd.s32 %s33, %s32
          %s592 = smul.addr %s591, 4
          %s593 = scalar_lea.hbm %s2, %s592
          %s595 = sshll.u32 %s580, 4
          %s596 = int_to_ptr.vmem [resolvable:$true] %s595
          %s597 = sshll.u32 %s593, 4
          %s598 = int_to_ptr.hbm [resolvable:$true] %s597
          %600 = dma.vmem_to_hbm [thread:$0]  %s596, 64, %s598, %s577
        $region44: #{tpu_custom_call.1} parent=27 // pred_fallthru
          _
        // Predicated region
        $region45: #{tpu_custom_call.1} parent=27 // pred_check
          %p601 = pneg %p154
        $region46: #{tpu_custom_call.1} parent=27 // pred_check_branch
          %603 = sbr.rel (%p601) target = $region48
        $region47: #{tpu_custom_call.1} parent=27 // pred_region
          %605 = vsyncadd %s582, 0
          %s606 = sadd.s32 %s33, %s32
          %s607 = smul.addr %s606, 4
          %s608 = scalar_lea.hbm %s3, %s607
          %s610 = sshll.u32 %s585, 4
          %s611 = int_to_ptr.vmem [resolvable:$true] %s610
          %s612 = sshll.u32 %s608, 4
          %s613 = int_to_ptr.hbm [resolvable:$true] %s612
          %615 = dma.vmem_to_hbm [thread:$0]  %s611, 64, %s613, %s582
        $region48: #{tpu_custom_call.1} parent=27 // pred_fallthru
          _
      $region28: #{tpu_custom_call.1} parent=5 // pred_fallthru
        _
      %p616 = scmp.le.s32.totalorder 2, %s22
      // Predicated region
      $region49: #{tpu_custom_call.1} parent=5 // pred_check
        %p617 = pneg %p616
      $region50: #{tpu_custom_call.1} parent=5 // pred_check_branch
        %619 = sbr.rel (%p617) target = $region52
      $region51: #{tpu_custom_call.1} parent=5 // pred_region
        %s620 = ssub.s32 %s22, 2
        // Predicated region
        $region53: #{tpu_custom_call.1} parent=51 // pred_check
          %p621 = pneg %p132
        $region54: #{tpu_custom_call.1} parent=51 // pred_check_branch
          %623 = sbr.rel (%p621) target = $region56
        $region55: #{tpu_custom_call.1} parent=51 // pred_region
          %s624 = sand.u32 %s117, 1
          %s625 = scalar_lea.sflag [#allocation4], %s624
          %s626 = sand.u32 %s117, 1
          %s627 = smul.addr %s626, 4
          %s628 = scalar_lea.vmem [#allocation7], %s627
          %630 = dma.done %s625, 64
        $region56: #{tpu_custom_call.1} parent=51 // pred_fallthru
          _
        // Predicated region
        $region57: #{tpu_custom_call.1} parent=51 // pred_check
          %p631 = pneg %p160
        $region58: #{tpu_custom_call.1} parent=51 // pred_check_branch
          %633 = sbr.rel (%p631) target = $region60
        $region59: #{tpu_custom_call.1} parent=51 // pred_region
          %s634 = sand.u32 %s145, 1
          %s635 = scalar_lea.sflag [#allocation9], %s634
          %s636 = sand.u32 %s145, 1
          %s637 = smul.addr %s636, 4
          %s638 = scalar_lea.vmem [#allocation8], %s637
          %640 = dma.done %s635, 64
        $region60: #{tpu_custom_call.1} parent=51 // pred_fallthru
          _
      $region52: #{tpu_custom_call.1} parent=5 // pred_fallthru
        _
    $region6: #{tpu_custom_call.1} parent=1 // loop_footer
      %s26 = sadd.s32 1, %s22
    $region7: #{tpu_custom_call.1} parent=1 // loop_footer_branch
      %21 = sbr.rel target = $region3
    $region8: #{tpu_custom_call.1} parent=1 // loop_exit
      _
    %641 = vsyncpa [#allocation3], 1
    %s642 = scalar_lea.sflag [#allocation3], 1
    %643 = vsyncpa %s642, 1
    %644 = vsyncpa [#allocation6], 1
    %s645 = scalar_lea.sflag [#allocation6], 1
    %646 = vsyncpa %s645, 1
    %647 = vsyncpa [#allocation4], 1
    %s648 = scalar_lea.sflag [#allocation4], 1
    %649 = vsyncpa %s648, 1
    %650 = vsyncpa [#allocation9], 1
    %s651 = scalar_lea.sflag [#allocation9], 1
    %652 = vsyncpa %s651, 1

</llo_original>
